<compile_context>
chip_gen: v5e
topology: v5e:2x2
jax: 0.10.0
libtpu: 0.0.40
codegen_flags: <defaults>
</compile_context>

<pallas_src>
import jax
import jax.numpy as jnp
from jax.experimental import pallas as pl
from jax.experimental.pallas import tpu as pltpu

N_PAD = 128  # lane-padded width of the 2-wide output inside the MXU


def _round_up(v, m):
    return (v + m - 1) // m * m


# ----------------------------------------------------------------------------
# Kernel
# ----------------------------------------------------------------------------
def mlp_kernel(x_ref, w1_ref, b1_ref, w2_ref, b2_ref, o_ref, acc_ref):
    # x:  (tile_b, K_pad)   input dtype (cast to operand dtype in-kernel)
    # w1: (K_pad, tn)       compute dtype (bf16 by default)
    # b1: (1, tn)           f32
    # w2: (tn, N_PAD)       compute dtype
    # b2: (1, N_PAD)        f32
    # o:  (tile_b, n_out)   lane-masked store (n_out == 2)
    # acc:(tile_b, N_PAD)   f32 accumulator across hidden-column tiles
    col = pl.program_id(1)

    @pl.when(col == 0)
    def _init():
        acc_ref[...] = jnp.zeros_like(acc_ref)

    # Layer 1 (column tile): operands in compute dtype, f32 accumulation.
    x = x_ref[...].astype(w1_ref.dtype)
    h = jnp.dot(x, w1_ref[...], preferred_element_type=jnp.float32)
    h = jnp.maximum(h + b1_ref[...], 0.0)          # bias + ReLU in f32 (VPU)
    # Dropout (eval / inference mode) == identity.

    # Layer 2 partial product for this column tile, accumulated in f32.
    acc_ref[...] += jnp.dot(h.astype(w2_ref.dtype), w2_ref[...],
                            preferred_element_type=jnp.float32)

    @pl.when(col == pl.num_programs(1) - 1)
    def _finalize():
        out = acc_ref[...] + b2_ref[...]
        o_ref[...] = out[:, :o_ref.shape[1]].astype(o_ref.dtype)


# ----------------------------------------------------------------------------
# One-time parameter preparation (pad + cast, hoisted out of the call path)
# ----------------------------------------------------------------------------
def prepare_params(w1, b1, w2, b2, *, compute_dtype=jnp.bfloat16):
    """Pad/cast CustomMLP params once.  Weights are (in, out) layout."""
    s_in, hidden = w1.shape
    hidden2, n_out = w2.shape
    assert hidden == hidden2 and b1.shape == (hidden,) and b2.shape == (n_out,)

    k_pad = max(128, _round_up(s_in, 128))     # contraction dim of layer 1
    h_pad = max(128, _round_up(hidden, 128))   # hidden dim (contraction of layer 2)

    w1_p = jnp.zeros((k_pad, h_pad), compute_dtype).at[:s_in, :hidden].set(
        w1.astype(compute_dtype))
    b1_p = jnp.zeros((1, h_pad), jnp.float32).at[0, :hidden].set(
        b1.astype(jnp.float32))
    w2_p = jnp.zeros((h_pad, N_PAD), compute_dtype).at[:hidden, :n_out].set(
        w2.astype(compute_dtype))
    b2_p = jnp.zeros((1, N_PAD), jnp.float32).at[0, :n_out].set(
        b2.astype(jnp.float32))
    return dict(w1=w1_p, b1=b1_p, w2=w2_p, b2=b2_p, s_in=s_in, n_out=n_out)


# ----------------------------------------------------------------------------
# Forward pass
# ----------------------------------------------------------------------------
def custom_mlp_forward(x, params, *, tile_b=512, resident_budget_bytes=48 << 20):
    """Forward pass of CustomMLP (eval mode).  x: (B, S); returns (B, 2)."""
    w1_p, b1_p, w2_p, b2_p = params["w1"], params["b1"], params["w2"], params["b2"]
    B, S = x.shape
    assert S == params["s_in"], "x feature dim does not match prepared params"
    k_pad, h_pad = w1_p.shape
    n_pad = w2_p.shape[1]
    n_out = params["n_out"]

    x_item = jnp.dtype(x.dtype).itemsize
    w_item = jnp.dtype(w1_p.dtype).itemsize

    # --- batch tiling: ragged-friendly, >=2 tiles when B is large so both
    #     v7x TensorCores get work on the "parallel" axis. -------------------
    align = 16 if x_item < 4 else 8
    n_bt = max(pl.cdiv(B, tile_b), 2 if B >= 256 else 1)
    tb = _round_up(pl.cdiv(B, n_bt), align)
    n_bt = pl.cdiv(B, tb)
    b_pad = n_bt * tb

    if (b_pad, k_pad) != (B, S):
        x_p = jnp.zeros((b_pad, k_pad), x.dtype).at[:B, :S].set(x)
    else:
        x_p = x  # already aligned: no padding copy

    # --- hidden-column tiling so the resident VMEM footprint fits budget ----
    fixed = 2 * tb * k_pad * x_item + 3 * tb * n_pad * 4 + (256 << 10)
    per_col = 2 * (k_pad * w_item + n_pad * w_item + 4)
    max_cols = max((resident_budget_bytes - fixed) // per_col, 128)
    m = h_pad // 128
    tn = 128
    for d in range(m, 0, -1):              # largest 128-multiple divisor of h_pad
        if m % d == 0 and 128 * d <= max_cols:
            tn = 128 * d
            break
    n_col = h_pad // tn
    resident = (n_col == 1)                # constant-index weights -> single buffer

    # --- explicit VMEM limit from the actual block footprint ----------------
    need = (2 * tb * k_pad * x_item                       # x blocks
            + 2 * k_pad * tn * w_item + 2 * tn * n_pad * w_item   # w1 / w2
            + 2 * tn * 4 + 2 * n_pad * 4                  # b1 / b2
            + 2 * tb * n_pad * 4                          # out blocks (lane-padded)
            + tb * n_pad * 4)                             # f32 accumulator scratch
    vmem_limit = int(min(max(need + (8 << 20), 32 << 20), 100 << 20))

    flops = 2 * b_pad * k_pad * h_pad + 2 * b_pad * h_pad * n_pad
    bytes_accessed = (x_p.size * x_item + w1_p.size * w_item + w2_p.size * w_item
                      + b1_p.size * 4 + b2_p.size * 4 + b_pad * n_out * x_item)

    out_shape = jax.ShapeDtypeStruct((b_pad, n_out), x.dtype)
    grid = (n_bt, n_col)

    def build(single_buffer):
        def rspec(shape, index_map, is_resident):
            if single_buffer and is_resident:
                return pl.BlockSpec(shape, index_map, pipeline_mode=pl.Buffered(1))
            return pl.BlockSpec(shape, index_map)

        return pl.pallas_call(
            mlp_kernel,
            out_shape=out_shape,
            grid=grid,
            in_specs=[
                pl.BlockSpec((tb, k_pad), lambda i, c: (i, 0)),        # x tile
                rspec((k_pad, tn), lambda i, c: (0, c), resident),     # w1 col tile
                rspec((1, tn), lambda i, c: (0, c), resident),         # b1 col tile
                rspec((tn, n_pad), lambda i, c: (c, 0), resident),     # w2 row tile
                rspec((1, n_pad), lambda i, c: (0, 0), True),          # b2 resident
            ],
            out_specs=pl.BlockSpec((tb, n_out), lambda i, c: (i, 0)),  # masked 2-wide
            scratch_shapes=[pltpu.VMEM((tb, n_pad), jnp.float32)],
            compiler_params=pltpu.CompilerParams(
                dimension_semantics=("parallel", "arbitrary"),
                vmem_limit_bytes=vmem_limit),
            cost_estimate=pl.CostEstimate(
                flops=flops, transcendentals=0, bytes_accessed=bytes_accessed),
        )

    try:
        out_p = build(True)(x_p, w1_p, b1_p, w2_p, b2_p)
    except Exception:
        # pipeline_mode=pl.Buffered(1) not supported on this jax/libtpu combo:
        # fall back to default double-buffered specs (correctness identical).
        out_p = build(False)(x_p, w1_p, b1_p, w2_p, b2_p)

    return out_p if b_pad == B else out_p[:B]


# ----------------------------------------------------------------------------
# Reference / init helpers
# ----------------------------------------------------------------------------
def init_params(key, seq_len):
    """nn.Linear-style init (uniform +/- 1/sqrt(fan_in)); weights stored (in, out)."""
    k1, k2, k3, k4 = jax.random.split(key, 4)
    bound = 1.0 / jnp.sqrt(seq_len)
    w1 = jax.random.uniform(k1, (seq_len, seq_len), jnp.float32, -bound, bound)
    b1 = jax.random.uniform(k2, (seq_len,), jnp.float32, -bound, bound)
    w2 = jax.random.uniform(k3, (seq_len, 2), jnp.float32, -bound, bound)
    b2 = jax.random.uniform(k4, (2,), jnp.float32, -bound, bound)
    return w1, b1, w2, b2


def _ref(x, w1, b1, w2, b2):
    return jnp.maximum(x @ w1 + b1, 0.0) @ w2 + b2   # eval-mode dropout == identity


if __name__ == "__main__":
    key = jax.random.PRNGKey(0)

    # --- small shapes consistent with the module (batch=8, seq_len=8) -------
    k_x, k_p = jax.random.split(key)
    batch, seq_len = 8, 8
    x = jax.random.normal(k_x, (batch, seq_len), jnp.float32)
    w1, b1, w2, b2 = init_params(k_p, seq_len)
    ref = _ref(x, w1, b1, w2, b2)

    # exact-precision path (f32 operands)
    params_f32 = prepare_params(w1, b1, w2, b2, compute_dtype=jnp.float32)
    out = jax.block_until_ready(custom_mlp_forward(x, params_f32))
    assert out.shape == (batch, 2)
    assert jnp.allclose(out, ref, atol=1e-5, rtol=1e-5)

    # default bf16-operand path (f32 accumulation) -> loose tolerance
    params_bf16 = prepare_params(w1, b1, w2, b2)
    out_bf = jax.block_until_ready(custom_mlp_forward(x, params_bf16))
    assert out_bf.shape == (batch, 2)
    assert jnp.allclose(out_bf, ref, atol=5e-2, rtol=5e-2)

    # --- larger ragged batch: multi-tile "parallel" grid, bf16 operands -----
    k_x2, k_p2 = jax.random.split(jax.random.PRNGKey(1))
    batch2, seq_len2 = 300, 128
    x2 = jax.random.normal(k_x2, (batch2, seq_len2), jnp.float32)
    w1b, b1b, w2b, b2b = init_params(k_p2, seq_len2)
    params2 = prepare_params(w1b, b1b, w2b, b2b)
    out2 = jax.block_until_ready(custom_mlp_forward(x2, params2))
    ref2 = _ref(x2, w1b, b1b, w2b, b2b)
    assert out2.shape == (batch2, 2)
    assert jnp.allclose(out2, ref2, atol=5e-2, rtol=5e-2)

    # --- force the hidden-column-tiled (large-S / v7x) reduction path -------
    k_x3, k_p3 = jax.random.split(jax.random.PRNGKey(2))
    batch3, seq_len3 = 64, 256
    x3 = jax.random.normal(k_x3, (batch3, seq_len3), jnp.float32)
    w1c, b1c, w2c, b2c = init_params(k_p3, seq_len3)
    params3 = prepare_params(w1c, b1c, w2c, b2c, compute_dtype=jnp.float32)
    out3 = jax.block_until_ready(
        custom_mlp_forward(x3, params3, resident_budget_bytes=1 << 18))
    ref3 = _ref(x3, w1c, b1c, w2c, b2c)
    assert out3.shape == (batch3, 2)
    assert jnp.allclose(out3, ref3, atol=1e-4, rtol=1e-4)

    print("KERNEL_OK")
</pallas_src>

<mosaic_0001>
module attributes {stable_mosaic.version = 11 : i64} {
  func.func @mlp_kernel(%arg0: i32, %arg1: i32, %arg2: memref<8x128xf32, #tpu.memory_space<vmem>>, %arg3: memref<128x128xf32, #tpu.memory_space<vmem>>, %arg4: memref<1x128xf32, #tpu.memory_space<vmem>>, %arg5: memref<128x128xf32, #tpu.memory_space<vmem>>, %arg6: memref<1x128xf32, #tpu.memory_space<vmem>>, %arg7: memref<8x2xf32, #tpu.memory_space<vmem>>, %arg8: memref<8x128xf32, #tpu.memory_space<vmem>>) attributes {dimension_semantics = [#tpu.dimension_semantics<parallel>, #tpu.dimension_semantics<arbitrary>], iteration_bounds = array<i64: 1, 1>, scalar_prefetch = 0 : i64, scratch_operands = 1 : i64, tpu.core_type = #tpu.core_type<tc>, window_params = [{transform_indices = @transform_0, window_bounds = array<i64: 8, 128>}, {pipeline_mode = #tpu.pipeline_mode<synchronous>, transform_indices = @transform_1, window_bounds = array<i64: 128, 128>}, {pipeline_mode = #tpu.pipeline_mode<synchronous>, transform_indices = @transform_2, window_bounds = array<i64: 1, 128>}, {pipeline_mode = #tpu.pipeline_mode<synchronous>, transform_indices = @transform_3, window_bounds = array<i64: 128, 128>}, {pipeline_mode = #tpu.pipeline_mode<synchronous>, transform_indices = @transform_4, window_bounds = array<i64: 1, 128>}, {transform_indices = @transform_5, window_bounds = array<i64: 8, 2>}]} {
    %c0_i32 = arith.constant 0 : i32
    %0 = arith.cmpi eq, %arg1, %c0_i32 : i32
    %1 = arith.extui %0 : i1 to i32
    %c0_i32_0 = arith.constant 0 : i32
    %2 = arith.cmpi ne, %1, %c0_i32_0 : i32
    scf.if %2 {
      %cst_16 = arith.constant 0.000000e+00 : f32
      %19 = vector.broadcast %cst_16 : f32 to vector<8x128xf32>
      %c0_17 = arith.constant 0 : index
      %c0_18 = arith.constant 0 : index
      %20 = vector.load %arg8[%c0_17, %c0_18] : memref<8x128xf32, #tpu.memory_space<vmem>>, vector<8x128xf32>
      tpu.vector_store %arg8[%c0_17, %c0_18], %19 {strides = array<i32>} : memref<8x128xf32, #tpu.memory_space<vmem>>, vector<8x128xf32>,
    } else {
    }
    %c0 = arith.constant 0 : index
    %c0_1 = arith.constant 0 : index
    %3 = vector.load %arg2[%c0, %c0_1] : memref<8x128xf32, #tpu.memory_space<vmem>>, vector<8x128xf32>
    %c0_2 = arith.constant 0 : index
    %c0_3 = arith.constant 0 : index
    %4 = vector.load %arg3[%c0_2, %c0_3] : memref<128x128xf32, #tpu.memory_space<vmem>>, vector<128x128xf32>
    %cst = arith.constant dense<0.000000e+00> : vector<8x128xf32>
    %5 = tpu.matmul %3, %4, %cst {dimension_numbers = #tpu.dot_dimension_numbers<[1], [0], [0], [1], [0, 0, 1, 1], [], []>} : vector<8x128xf32>, vector<128x128xf32>, vector<8x128xf32> -> vector<8x128xf32>
    %c0_4 = arith.constant 0 : index
    %c0_5 = arith.constant 0 : index
    %6 = vector.load %arg4[%c0_4, %c0_5] : memref<1x128xf32, #tpu.memory_space<vmem>>, vector<1x128xf32>
    %7 = vector.broadcast %6 : vector<1x128xf32> to vector<8x128xf32>
    %8 = arith.addf %5, %7 : vector<8x128xf32>
    %cst_6 = arith.constant 0.000000e+00 : f32
    %9 = vector.broadcast %cst_6 : f32 to vector<8x128xf32>
    %10 = arith.maximumf %8, %9 : vector<8x128xf32>
    %c0_7 = arith.constant 0 : index
    %c0_8 = arith.constant 0 : index
    %11 = vector.load %arg8[%c0_7, %c0_8] : memref<8x128xf32, #tpu.memory_space<vmem>>, vector<8x128xf32>
    %c0_9 = arith.constant 0 : index
    %c0_10 = arith.constant 0 : index
    %12 = vector.load %arg5[%c0_9, %c0_10] : memref<128x128xf32, #tpu.memory_space<vmem>>, vector<128x128xf32>
    %cst_11 = arith.constant dense<0.000000e+00> : vector<8x128xf32>
    %13 = tpu.matmul %10, %12, %cst_11 {dimension_numbers = #tpu.dot_dimension_numbers<[1], [0], [0], [1], [0, 0, 1, 1], [], []>} : vector<8x128xf32>, vector<128x128xf32>, vector<8x128xf32> -> vector<8x128xf32>
    %14 = arith.addf %11, %13 : vector<8x128xf32>
    %c0_12 = arith.constant 0 : index
    %c0_13 = arith.constant 0 : index
    %15 = vector.load %arg8[%c0_12, %c0_13] : memref<8x128xf32, #tpu.memory_space<vmem>>, vector<8x128xf32>
    tpu.vector_store %arg8[%c0_12, %c0_13], %14 {strides = array<i32>} : memref<8x128xf32, #tpu.memory_space<vmem>>, vector<8x128xf32>,
    %c0_i32_14 = arith.constant 0 : i32
    %16 = arith.cmpi eq, %arg1, %c0_i32_14 : i32
    %17 = arith.extui %16 : i1 to i32
    %c0_i32_15 = arith.constant 0 : i32
    %18 = arith.cmpi ne, %17, %c0_i32_15 : i32
    scf.if %18 {
      %c0_16 = arith.constant 0 : index
      %c0_17 = arith.constant 0 : index
      %19 = vector.load %arg8[%c0_16, %c0_17] : memref<8x128xf32, #tpu.memory_space<vmem>>, vector<8x128xf32>
      %c0_18 = arith.constant 0 : index
      %c0_19 = arith.constant 0 : index
      %20 = vector.load %arg6[%c0_18, %c0_19] : memref<1x128xf32, #tpu.memory_space<vmem>>, vector<1x128xf32>
      %21 = vector.broadcast %20 : vector<1x128xf32> to vector<8x128xf32>
      %22 = arith.addf %19, %21 : vector<8x128xf32>
      %23 = vector.extract_strided_slice %22 {offsets = [0, 0], sizes = [8, 2], strides = [1, 1]} : vector<8x128xf32> to vector<8x2xf32>
      %c0_20 = arith.constant 0 : index
      %c0_21 = arith.constant 0 : index
      %24 = vector.load %arg7[%c0_20, %c0_21] : memref<8x2xf32, #tpu.memory_space<vmem>>, vector<8x2xf32>
      tpu.vector_store %arg7[%c0_20, %c0_21], %23 {strides = array<i32>} : memref<8x2xf32, #tpu.memory_space<vmem>>, vector<8x2xf32>,
    } else {
    }
    return
  }
  func.func @transform_0(%arg0: i32, %arg1: i32) -> (i32, i32) {
    %c0_i32 = arith.constant 0 : i32
    %c0_i32_0 = arith.constant 0 : i32
    return %arg0, %c0_i32 : i32, i32
  }
  func.func @transform_1(%arg0: i32, %arg1: i32) -> (i32, i32) {
    %c0_i32 = arith.constant 0 : i32
    %c0_i32_0 = arith.constant 0 : i32
    return %c0_i32, %arg1 : i32, i32
  }
  func.func @transform_2(%arg0: i32, %arg1: i32) -> (i32, i32) {
    %c0_i32 = arith.constant 0 : i32
    %c0_i32_0 = arith.constant 0 : i32
    return %c0_i32, %arg1 : i32, i32
  }
  func.func @transform_3(%arg0: i32, %arg1: i32) -> (i32, i32) {
    %c0_i32 = arith.constant 0 : i32
    %c0_i32_0 = arith.constant 0 : i32
    return %arg1, %c0_i32 : i32, i32
  }
  func.func @transform_4(%arg0: i32, %arg1: i32) -> (i32, i32) {
    %c0_i32 = arith.constant 0 : i32
    %c0_i32_0 = arith.constant 0 : i32
    %c0_i32_1 = arith.constant 0 : i32
    return %c0_i32, %c0_i32_0 : i32, i32
  }
  func.func @transform_5(%arg0: i32, %arg1: i32) -> (i32, i32) {
    %c0_i32 = arith.constant 0 : i32
    %c0_i32_0 = arith.constant 0 : i32
    return %arg0, %c0_i32 : i32, i32
  }
}

module attributes {stable_mosaic.version = 11 : i64} {
  func.func @mlp_kernel(%arg0: i32, %arg1: i32, %arg2: memref<8x128xf32, #tpu.memory_space<vmem>>, %arg3: memref<128x128xf32, #tpu.memory_space<vmem>>, %arg4: memref<1x128xf32, #tpu.memory_space<vmem>>, %arg5: memref<128x128xf32, #tpu.memory_space<vmem>>, %arg6: memref<1x128xf32, #tpu.memory_space<vmem>>, %arg7: memref<8x2xf32, #tpu.memory_space<vmem>>, %arg8: memref<8x128xf32, #tpu.memory_space<vmem>>) attributes {dimension_semantics = [#tpu.dimension_semantics<parallel>, #tpu.dimension_semantics<arbitrary>], iteration_bounds = array<i64: 1, 1>, scalar_prefetch = 0 : i64, scratch_operands = 1 : i64, tpu.core_type = #tpu.core_type<tc>, window_params = [{transform_indices = @transform_0, window_bounds = array<i64: 8, 128>}, {transform_indices = @transform_1, window_bounds = array<i64: 128, 128>}, {transform_indices = @transform_2, window_bounds = array<i64: 1, 128>}, {transform_indices = @transform_3, window_bounds = array<i64: 128, 128>}, {pipeline_mode = #tpu.pipeline_mode<synchronous>, transform_indices = @transform_4, window_bounds = array<i64: 1, 128>}, {transform_indices = @transform_5, window_bounds = array<i64: 8, 2>}]} {
    %c0_i32 = arith.constant 0 : i32
    %0 = arith.cmpi eq, %arg1, %c0_i32 : i32
    %1 = arith.extui %0 : i1 to i32
    %c0_i32_0 = arith.constant 0 : i32
    %2 = arith.cmpi ne, %1, %c0_i32_0 : i32
    scf.if %2 {
      %cst_16 = arith.constant 0.000000e+00 : f32
      %19 = vector.broadcast %cst_16 : f32 to vector<8x128xf32>
      %c0_17 = arith.constant 0 : index
      %c0_18 = arith.constant 0 : index
      %20 = vector.load %arg8[%c0_17, %c0_18] : memref<8x128xf32, #tpu.memory_space<vmem>>, vector<8x128xf32>
      tpu.vector_store %arg8[%c0_17, %c0_18], %19 {strides = array<i32>} : memref<8x128xf32, #tpu.memory_space<vmem>>, vector<8x128xf32>,
    } else {
    }
    %c0 = arith.constant 0 : index
    %c0_1 = arith.constant 0 : index
    %3 = vector.load %arg2[%c0, %c0_1] : memref<8x128xf32, #tpu.memory_space<vmem>>, vector<8x128xf32>
    %c0_2 = arith.constant 0 : index
    %c0_3 = arith.constant 0 : index
    %4 = vector.load %arg3[%c0_2, %c0_3] : memref<128x128xf32, #tpu.memory_space<vmem>>, vector<128x128xf32>
    %cst = arith.constant dense<0.000000e+00> : vector<8x128xf32>
    %5 = tpu.matmul %3, %4, %cst {dimension_numbers = #tpu.dot_dimension_numbers<[1], [0], [0], [1], [0, 0, 1, 1], [], []>} : vector<8x128xf32>, vector<128x128xf32>, vector<8x128xf32> -> vector<8x128xf32>
    %c0_4 = arith.constant 0 : index
    %c0_5 = arith.constant 0 : index
    %6 = vector.load %arg4[%c0_4, %c0_5] : memref<1x128xf32, #tpu.memory_space<vmem>>, vector<1x128xf32>
    %7 = vector.broadcast %6 : vector<1x128xf32> to vector<8x128xf32>
    %8 = arith.addf %5, %7 : vector<8x128xf32>
    %cst_6 = arith.constant 0.000000e+00 : f32
    %9 = vector.broadcast %cst_6 : f32 to vector<8x128xf32>
    %10 = arith.maximumf %8, %9 : vector<8x128xf32>
    %c0_7 = arith.constant 0 : index
    %c0_8 = arith.constant 0 : index
    %11 = vector.load %arg8[%c0_7, %c0_8] : memref<8x128xf32, #tpu.memory_space<vmem>>, vector<8x128xf32>
    %c0_9 = arith.constant 0 : index
    %c0_10 = arith.constant 0 : index
    %12 = vector.load %arg5[%c0_9, %c0_10] : memref<128x128xf32, #tpu.memory_space<vmem>>, vector<128x128xf32>
    %cst_11 = arith.constant dense<0.000000e+00> : vector<8x128xf32>
    %13 = tpu.matmul %10, %12, %cst_11 {dimension_numbers = #tpu.dot_dimension_numbers<[1], [0], [0], [1], [0, 0, 1, 1], [], []>} : vector<8x128xf32>, vector<128x128xf32>, vector<8x128xf32> -> vector<8x128xf32>
    %14 = arith.addf %11, %13 : vector<8x128xf32>
    %c0_12 = arith.constant 0 : index
    %c0_13 = arith.constant 0 : index
    %15 = vector.load %arg8[%c0_12, %c0_13] : memref<8x128xf32, #tpu.memory_space<vmem>>, vector<8x128xf32>
    tpu.vector_store %arg8[%c0_12, %c0_13], %14 {strides = array<i32>} : memref<8x128xf32, #tpu.memory_space<vmem>>, vector<8x128xf32>,
    %c0_i32_14 = arith.constant 0 : i32
    %16 = arith.cmpi eq, %arg1, %c0_i32_14 : i32
    %17 = arith.extui %16 : i1 to i32
    %c0_i32_15 = arith.constant 0 : i32
    %18 = arith.cmpi ne, %17, %c0_i32_15 : i32
    scf.if %18 {
      %c0_16 = arith.constant 0 : index
      %c0_17 = arith.constant 0 : index
      %19 = vector.load %arg8[%c0_16, %c0_17] : memref<8x128xf32, #tpu.memory_space<vmem>>, vector<8x128xf32>
      %c0_18 = arith.constant 0 : index
      %c0_19 = arith.constant 0 : index
      %20 = vector.load %arg6[%c0_18, %c0_19] : memref<1x128xf32, #tpu.memory_space<vmem>>, vector<1x128xf32>
      %21 = vector.broadcast %20 : vector<1x128xf32> to vector<8x128xf32>
      %22 = arith.addf %19, %21 : vector<8x128xf32>
      %23 = vector.extract_strided_slice %22 {offsets = [0, 0], sizes = [8, 2], strides = [1, 1]} : vector<8x128xf32> to vector<8x2xf32>
      %c0_20 = arith.constant 0 : index
      %c0_21 = arith.constant 0 : index
      %24 = vector.load %arg7[%c0_20, %c0_21] : memref<8x2xf32, #tpu.memory_space<vmem>>, vector<8x2xf32>
      tpu.vector_store %arg7[%c0_20, %c0_21], %23 {strides = array<i32>} : memref<8x2xf32, #tpu.memory_space<vmem>>, vector<8x2xf32>,
    } else {
    }
    return
  }
  func.func @transform_0(%arg0: i32, %arg1: i32) -> (i32, i32) {
    %c0_i32 = arith.constant 0 : i32
    %c0_i32_0 = arith.constant 0 : i32
    return %arg0, %c0_i32 : i32, i32
  }
  func.func @transform_1(%arg0: i32, %arg1: i32) -> (i32, i32) {
    %c0_i32 = arith.constant 0 : i32
    %c0_i32_0 = arith.constant 0 : i32
    return %c0_i32, %arg1 : i32, i32
  }
  func.func @transform_2(%arg0: i32, %arg1: i32) -> (i32, i32) {
    %c0_i32 = arith.constant 0 : i32
    %c0_i32_0 = arith.constant 0 : i32
    return %c0_i32, %arg1 : i32, i32
  }
  func.func @transform_3(%arg0: i32, %arg1: i32) -> (i32, i32) {
    %c0_i32 = arith.constant 0 : i32
    %c0_i32_0 = arith.constant 0 : i32
    return %arg1, %c0_i32 : i32, i32
  }
  func.func @transform_4(%arg0: i32, %arg1: i32) -> (i32, i32) {
    %c0_i32 = arith.constant 0 : i32
    %c0_i32_0 = arith.constant 0 : i32
    %c0_i32_1 = arith.constant 0 : i32
    return %c0_i32, %c0_i32_0 : i32, i32
  }
  func.func @transform_5(%arg0: i32, %arg1: i32) -> (i32, i32) {
    %c0_i32 = arith.constant 0 : i32
    %c0_i32_0 = arith.constant 0 : i32
    return %arg0, %c0_i32 : i32, i32
  }
}

</mosaic_0001>

<llo_original>
// kernel: tpu_custom_call.1
$region0: #{tpu_custom_call.1}
  #allocation0 [shape = 'u32[]', space=smem, size = 0x4, offset = 0x4, fixed_abs, tag = 'smem constant byte address 0x4 - core index']
  #allocation1 [shape = 'u32[72,128]{1,0:T(1,128)}', space=vmem, size = 0x9000, scoped, tag = 'internal scratch']
  #allocation2 [shape = 'f32[8,128]{1,0:T(8,128)}', space=vmem, size = 0x1000, scoped, tag = 'scratch operand']
  %s0 = inlined_call_operand.hbm [shape: f32[8,128], index: 0, kind: input, shape index: {}]
  %s1 = inlined_call_operand.hbm [shape: f32[128,128], index: 1, kind: input, shape index: {}]
  %s2 = inlined_call_operand.vmem [shape: f32[1,128], index: 2, kind: input, shape index: {}]
  %s3 = inlined_call_operand.hbm [shape: f32[128,128], index: 3, kind: input, shape index: {}]
  %s4 = inlined_call_operand.vmem [shape: f32[1,128], index: 4, kind: input, shape index: {}]
  %s5 = inlined_call_operand.vmem [shape: f32[8,2], index: 5, kind: output, shape index: {}]
  %s6 = sld [smem:[#allocation0]]
  $region50: #{tpu_custom_call.1} parent=0
    _
  %s8 = ssub.s32 1, %s6
  %s9 = scalar_select 0, %s8, %s6
  $region1: #{tpu_custom_call.1} parent=0
    #allocation3 [shape = 'u8[4096]{0}', space=vmem, size = 0x1000, scoped, tag = 'input window, operand 0, single buffered']
    #allocation4 [shape = 's32[1]{0}', space=sflag, size = 0x4, scoped, tag = 'scoped memory for tpu_custom_call.1']
    #allocation5 [shape = 'u8[65536]{0}', space=vmem, size = 0x10000, scoped, tag = 'input window, operand 1, single buffered']
    #allocation6 [shape = 's32[1]{0}', space=sflag, size = 0x4, scoped, tag = 'scoped memory for tpu_custom_call.1']
    #allocation7 [shape = 'u8[65536]{0}', space=vmem, size = 0x10000, scoped, tag = 'input window, operand 3, single buffered']
    %10 = vsyncpa [#allocation4], 0
    %11 = vsyncpa [#allocation6], 0
    // Predicated region
    $region2: #{tpu_custom_call.1} parent=1 // pred_check
      _
    $region3: #{tpu_custom_call.1} parent=1 // pred_check_branch
      %13 = sbr.rel (0) target = $region5
    $region4: #{tpu_custom_call.1} parent=1 // pred_region
      %15 = vsyncadd [#allocation4], 0
      %s17 = sshll.u32 %s0, 4
      %s18 = int_to_ptr.hbm [resolvable:$true] %s17
      %s19 = sshll.u32 [#allocation3], 4
      %s20 = int_to_ptr.vmem [resolvable:$true] %s19
      %22 = dma.hbm_to_vmem [thread:$0]  %s18, 128, %s20, [#allocation4]
    $region5: #{tpu_custom_call.1} parent=1 // pred_fallthru
      _
    // Predicated region
    $region6: #{tpu_custom_call.1} parent=1 // pred_check
      _
    $region7: #{tpu_custom_call.1} parent=1 // pred_check_branch
      %24 = sbr.rel (0) target = $region9
    $region8: #{tpu_custom_call.1} parent=1 // pred_region
      %26 = vsyncadd [#allocation6], 0
      %s27 = sshll.u32 %s1, 4
      %s28 = int_to_ptr.hbm [resolvable:$true] %s27
      %s29 = sshll.u32 [#allocation5], 4
      %s30 = int_to_ptr.vmem [resolvable:$true] %s29
      %35 = dma.hbm_to_vmem [thread:$0]  %s28, 2048, %s30, [#allocation6], 128, 128, 8
    $region9: #{tpu_custom_call.1} parent=1 // pred_fallthru
      _
    // Predicated region
    $region10: #{tpu_custom_call.1} parent=1 // pred_check
      _
    $region11: #{tpu_custom_call.1} parent=1 // pred_check_branch
      %37 = sbr.rel (0) target = $region13
    $region12: #{tpu_custom_call.1} parent=1 // pred_region
      _
    $region13: #{tpu_custom_call.1} parent=1 // pred_fallthru
      _
    // Predicated region
    $region14: #{tpu_custom_call.1} parent=1 // pred_check
      _
    $region15: #{tpu_custom_call.1} parent=1 // pred_check_branch
      %39 = sbr.rel (0) target = $region17
    $region16: #{tpu_custom_call.1} parent=1 // pred_region
      %41 = vsyncadd [#allocation6], 0
      %s42 = sshll.u32 %s3, 4
      %s43 = int_to_ptr.hbm [resolvable:$true] %s42
      %s44 = sshll.u32 [#allocation7], 4
      %s45 = int_to_ptr.vmem [resolvable:$true] %s44
      %50 = dma.hbm_to_vmem [thread:$0]  %s43, 2048, %s45, [#allocation6], 128, 128, 8
    $region17: #{tpu_custom_call.1} parent=1 // pred_fallthru
      _
    // Predicated region
    $region18: #{tpu_custom_call.1} parent=1 // pred_check
      _
    $region19: #{tpu_custom_call.1} parent=1 // pred_check_branch
      %52 = sbr.rel (0) target = $region21
    $region20: #{tpu_custom_call.1} parent=1 // pred_region
      _
    $region21: #{tpu_custom_call.1} parent=1 // pred_fallthru
      _
    // Predicated region
    $region22: #{tpu_custom_call.1} parent=1 // pred_check
      _
    $region23: #{tpu_custom_call.1} parent=1 // pred_check_branch
      %54 = sbr.rel (0) target = $region25
    $region24: #{tpu_custom_call.1} parent=1 // pred_region
      %56 = dma.done [#allocation4], 128
    $region25: #{tpu_custom_call.1} parent=1 // pred_fallthru
      _
    // Predicated region
    $region26: #{tpu_custom_call.1} parent=1 // pred_check
      _
    $region27: #{tpu_custom_call.1} parent=1 // pred_check_branch
      %58 = sbr.rel (0) target = $region29
    $region28: #{tpu_custom_call.1} parent=1 // pred_region
      %60 = dma.done [#allocation6], 2048
    $region29: #{tpu_custom_call.1} parent=1 // pred_fallthru
      _
    // Predicated region
    $region30: #{tpu_custom_call.1} parent=1 // pred_check
      _
    $region31: #{tpu_custom_call.1} parent=1 // pred_check_branch
      %62 = sbr.rel (0) target = $region33
    $region32: #{tpu_custom_call.1} parent=1 // pred_region
      %64 = dma.done [#allocation6], 2048
    $region33: #{tpu_custom_call.1} parent=1 // pred_fallthru
      _
    %p65 = scmp.eq.s32.totalorder 0, 0
    // Predicated region
    $region34: #{tpu_custom_call.1} parent=1 // pred_check
      %p66 = pneg %p65
    $region35: #{tpu_custom_call.1} parent=1 // pred_check_branch
      %68 = sbr.rel (%p66) target = $region37
    $region36: #{tpu_custom_call.1} parent=1 // pred_region
      %69 = vst [vmem:[#allocation2] sm:$0xff] 0.0
    $region37: #{tpu_custom_call.1} parent=1 // pred_fallthru
      _
    %v70 = vld [vmem:[#allocation3] sm:$0xff]
    %v71 = vld [vmem:[#allocation5] sm:$0xff]
    %v72 = vld [vmem:[#allocation5 + $0x8] sm:$0xff]
    %v73 = vld [vmem:[#allocation5 + $0x10] sm:$0xff]
    %v74 = vld [vmem:[#allocation5 + $0x18] sm:$0xff]
    %v75 = vld [vmem:[#allocation5 + $0x20] sm:$0xff]
    %v76 = vld [vmem:[#allocation5 + $0x28] sm:$0xff]
    %v77 = vld [vmem:[#allocation5 + $0x30] sm:$0xff]
    %v78 = vld [vmem:[#allocation5 + $0x38] sm:$0xff]
    %v79 = vld [vmem:[#allocation5 + $0x40] sm:$0xff]
    %v80 = vld [vmem:[#allocation5 + $0x48] sm:$0xff]
    %v81 = vld [vmem:[#allocation5 + $0x50] sm:$0xff]
    %v82 = vld [vmem:[#allocation5 + $0x58] sm:$0xff]
    %v83 = vld [vmem:[#allocation5 + $0x60] sm:$0xff]
    %v84 = vld [vmem:[#allocation5 + $0x68] sm:$0xff]
    %v85 = vld [vmem:[#allocation5 + $0x70] sm:$0xff]
    %v86 = vld [vmem:[#allocation5 + $0x78] sm:$0xff]
    %v87 = vld [vmem:[%s2] sm:$0x1]
    %v89 = vperm.slane %v87, 0
    %91 = vmatpush.msra.mxu0 %v86
    %92 = vmatpush.msra.mxu0 %v85
    %93 = vmatpush.msra.mxu0 %v84
    %94 = vmatpush.msra.mxu0 %v83
    %95 = vmatpush.msra.mxu0 %v82
    %96 = vmatpush.msra.mxu0 %v81
    %97 = vmatpush.msra.mxu0 %v80
    %98 = vmatpush.msra.mxu0 %v79
    %99 = vmatpush.msra.mxu0 %v78
    %100 = vmatpush.msra.mxu0 %v77
    %101 = vmatpush.msra.mxu0 %v76
    %102 = vmatpush.msra.mxu0 %v75
    %103 = vmatpush.msra.mxu0 %v74
    %104 = vmatpush.msra.mxu0 %v73
    %105 = vmatpush.msra.mxu0 %v72
    %106 = vmatpush.msra.mxu0 %v71
    %107 = vmatmul.f32.gmra.mxu0 %v70
    %v108 = vpop.f32.mrf.mxu0
    %v109 = vadd.f32 %v89, %v108
    %110 = vdwg.mxu0
    %v111 = vmax.f32 %v109, 0.0
    %v112 = vld [vmem:[#allocation2] sm:$0xff]
    %v113 = vld [vmem:[#allocation7] sm:$0xff]
    %v114 = vld [vmem:[#allocation7 + $0x8] sm:$0xff]
    %v115 = vld [vmem:[#allocation7 + $0x10] sm:$0xff]
    %v116 = vld [vmem:[#allocation7 + $0x18] sm:$0xff]
    %v117 = vld [vmem:[#allocation7 + $0x20] sm:$0xff]
    %v118 = vld [vmem:[#allocation7 + $0x28] sm:$0xff]
    %v119 = vld [vmem:[#allocation7 + $0x30] sm:$0xff]
    %v120 = vld [vmem:[#allocation7 + $0x38] sm:$0xff]
    %v121 = vld [vmem:[#allocation7 + $0x40] sm:$0xff]
    %v122 = vld [vmem:[#allocation7 + $0x48] sm:$0xff]
    %v123 = vld [vmem:[#allocation7 + $0x50] sm:$0xff]
    %v124 = vld [vmem:[#allocation7 + $0x58] sm:$0xff]
    %v125 = vld [vmem:[#allocation7 + $0x60] sm:$0xff]
    %v126 = vld [vmem:[#allocation7 + $0x68] sm:$0xff]
    %v127 = vld [vmem:[#allocation7 + $0x70] sm:$0xff]
    %v128 = vld [vmem:[#allocation7 + $0x78] sm:$0xff]
    %129 = vmatpush.msra.mxu0 %v128
    %130 = vmatpush.msra.mxu0 %v127
    %131 = vmatpush.msra.mxu0 %v126
    %132 = vmatpush.msra.mxu0 %v125
    %133 = vmatpush.msra.mxu0 %v124
    %134 = vmatpush.msra.mxu0 %v123
    %135 = vmatpush.msra.mxu0 %v122
    %136 = vmatpush.msra.mxu0 %v121
    %137 = vmatpush.msra.mxu0 %v120
    %138 = vmatpush.msra.mxu0 %v119
    %139 = vmatpush.msra.mxu0 %v118
    %140 = vmatpush.msra.mxu0 %v117
    %141 = vmatpush.msra.mxu0 %v116
    %142 = vmatpush.msra.mxu0 %v115
    %143 = vmatpush.msra.mxu0 %v114
    %144 = vmatpush.msra.mxu0 %v113
    %145 = vmatmul.f32.gmra.mxu0 %v111
    %v146 = vpop.f32.mrf.mxu0
    %v147 = vadd.f32 0.0, %v146
    %148 = vdwg.mxu0
    %v149 = vadd.f32 %v112, %v147
    %150 = vst [vmem:[#allocation2] sm:$0xff] %v149
    // Predicated region
    $region38: #{tpu_custom_call.1} parent=1 // pred_check
      %p151 = pneg %p65
    $region39: #{tpu_custom_call.1} parent=1 // pred_check_branch
      %153 = sbr.rel (%p151) target = $region41
    $region40: #{tpu_custom_call.1} parent=1 // pred_region
      %v154 = vld [vmem:[#allocation2] sm:$0xff]
      %v155 = vld [vmem:[%s4] sm:$0x1]
      %v157 = vperm.slane %v155, 0
      %v159 = vadd.f32 %v154, %v157
      %vm160 = vcmask 15360
      %161 = vst.msk [vmem:[%s5] sm:$0xff] %vm160, %v159
    $region41: #{tpu_custom_call.1} parent=1 // pred_fallthru
      _
    // Predicated region
    $region42: #{tpu_custom_call.1} parent=1 // pred_check
      _
    $region43: #{tpu_custom_call.1} parent=1 // pred_check_branch
      %163 = sbr.rel (0) target = $region45
    $region44: #{tpu_custom_call.1} parent=1 // pred_region
      _
    $region45: #{tpu_custom_call.1} parent=1 // pred_fallthru
      _
    // Predicated region
    $region46: #{tpu_custom_call.1} parent=1 // pred_check
      _
    $region47: #{tpu_custom_call.1} parent=1 // pred_check_branch
      %165 = sbr.rel (0) target = $region49
    $region48: #{tpu_custom_call.1} parent=1 // pred_region
      _
    $region49: #{tpu_custom_call.1} parent=1 // pred_fallthru
      _
    %166 = vsyncpa [#allocation4], 1
    %167 = vsyncpa [#allocation6], 1

// kernel: tpu_custom_call.1
$region0: #{tpu_custom_call.1}
  #allocation0 [shape = 'u32[]', space=smem, size = 0x4, offset = 0x4, fixed_abs, tag = 'smem constant byte address 0x4 - core index']
  #allocation1 [shape = 'u32[72,128]{1,0:T(1,128)}', space=vmem, size = 0x9000, scoped, tag = 'internal scratch']
  #allocation2 [shape = 'f32[8,128]{1,0:T(8,128)}', space=vmem, size = 0x1000, scoped, tag = 'scratch operand']
  %s0 = inlined_call_operand.hbm [shape: f32[8,128], index: 0, kind: input, shape index: {}]
  %s1 = inlined_call_operand.hbm [shape: f32[128,128], index: 1, kind: input, shape index: {}]
  %s2 = inlined_call_operand.vmem [shape: f32[1,128], index: 2, kind: input, shape index: {}]
  %s3 = inlined_call_operand.hbm [shape: f32[128,128], index: 3, kind: input, shape index: {}]
  %s4 = inlined_call_operand.vmem [shape: f32[1,128], index: 4, kind: input, shape index: {}]
  %s5 = inlined_call_operand.vmem [shape: f32[8,2], index: 5, kind: output, shape index: {}]
  %s6 = sld [smem:[#allocation0]]
  $region50: #{tpu_custom_call.1} parent=0
    _
  %s8 = ssub.s32 1, %s6
  %s9 = scalar_select 0, %s8, %s6
  $region1: #{tpu_custom_call.1} parent=0
    #allocation3 [shape = 'u8[4096]{0}', space=vmem, size = 0x1000, scoped, tag = 'input window, operand 0, single buffered']
    #allocation4 [shape = 's32[1]{0}', space=sflag, size = 0x4, scoped, tag = 'scoped memory for tpu_custom_call.1']
    #allocation5 [shape = 'u8[65536]{0}', space=vmem, size = 0x10000, scoped, tag = 'input window, operand 1, single buffered']
    #allocation6 [shape = 's32[1]{0}', space=sflag, size = 0x4, scoped, tag = 'scoped memory for tpu_custom_call.1']
    #allocation7 [shape = 'u8[65536]{0}', space=vmem, size = 0x10000, scoped, tag = 'input window, operand 3, single buffered']
    %10 = vsyncpa [#allocation4], 0
    %11 = vsyncpa [#allocation6], 0
    // Predicated region
    $region2: #{tpu_custom_call.1} parent=1 // pred_check
      _
    $region3: #{tpu_custom_call.1} parent=1 // pred_check_branch
      %13 = sbr.rel (0) target = $region5
    $region4: #{tpu_custom_call.1} parent=1 // pred_region
      %15 = vsyncadd [#allocation4], 0
      %s17 = sshll.u32 %s0, 4
      %s18 = int_to_ptr.hbm [resolvable:$true] %s17
      %s19 = sshll.u32 [#allocation3], 4
      %s20 = int_to_ptr.vmem [resolvable:$true] %s19
      %22 = dma.hbm_to_vmem [thread:$0]  %s18, 128, %s20, [#allocation4]
    $region5: #{tpu_custom_call.1} parent=1 // pred_fallthru
      _
    // Predicated region
    $region6: #{tpu_custom_call.1} parent=1 // pred_check
      _
    $region7: #{tpu_custom_call.1} parent=1 // pred_check_branch
      %24 = sbr.rel (0) target = $region9
    $region8: #{tpu_custom_call.1} parent=1 // pred_region
      %26 = vsyncadd [#allocation6], 0
      %s27 = sshll.u32 %s1, 4
      %s28 = int_to_ptr.hbm [resolvable:$true] %s27
      %s29 = sshll.u32 [#allocation5], 4
      %s30 = int_to_ptr.vmem [resolvable:$true] %s29
      %35 = dma.hbm_to_vmem [thread:$0]  %s28, 2048, %s30, [#allocation6], 128, 128, 8
    $region9: #{tpu_custom_call.1} parent=1 // pred_fallthru
      _
    // Predicated region
    $region10: #{tpu_custom_call.1} parent=1 // pred_check
      _
    $region11: #{tpu_custom_call.1} parent=1 // pred_check_branch
      %37 = sbr.rel (0) target = $region13
    $region12: #{tpu_custom_call.1} parent=1 // pred_region
      _
    $region13: #{tpu_custom_call.1} parent=1 // pred_fallthru
      _
    // Predicated region
    $region14: #{tpu_custom_call.1} parent=1 // pred_check
      _
    $region15: #{tpu_custom_call.1} parent=1 // pred_check_branch
      %39 = sbr.rel (0) target = $region17
    $region16: #{tpu_custom_call.1} parent=1 // pred_region
      %41 = vsyncadd [#allocation6], 0
      %s42 = sshll.u32 %s3, 4
      %s43 = int_to_ptr.hbm [resolvable:$true] %s42
      %s44 = sshll.u32 [#allocation7], 4
      %s45 = int_to_ptr.vmem [resolvable:$true] %s44
      %50 = dma.hbm_to_vmem [thread:$0]  %s43, 2048, %s45, [#allocation6], 128, 128, 8
    $region17: #{tpu_custom_call.1} parent=1 // pred_fallthru
      _
    // Predicated region
    $region18: #{tpu_custom_call.1} parent=1 // pred_check
      _
    $region19: #{tpu_custom_call.1} parent=1 // pred_check_branch
      %52 = sbr.rel (0) target = $region21
    $region20: #{tpu_custom_call.1} parent=1 // pred_region
      _
    $region21: #{tpu_custom_call.1} parent=1 // pred_fallthru
      _
    // Predicated region
    $region22: #{tpu_custom_call.1} parent=1 // pred_check
      _
    $region23: #{tpu_custom_call.1} parent=1 // pred_check_branch
      %54 = sbr.rel (0) target = $region25
    $region24: #{tpu_custom_call.1} parent=1 // pred_region
      %56 = dma.done [#allocation4], 128
    $region25: #{tpu_custom_call.1} parent=1 // pred_fallthru
      _
    // Predicated region
    $region26: #{tpu_custom_call.1} parent=1 // pred_check
      _
    $region27: #{tpu_custom_call.1} parent=1 // pred_check_branch
      %58 = sbr.rel (0) target = $region29
    $region28: #{tpu_custom_call.1} parent=1 // pred_region
      %60 = dma.done [#allocation6], 2048
    $region29: #{tpu_custom_call.1} parent=1 // pred_fallthru
      _
    // Predicated region
    $region30: #{tpu_custom_call.1} parent=1 // pred_check
      _
    $region31: #{tpu_custom_call.1} parent=1 // pred_check_branch
      %62 = sbr.rel (0) target = $region33
    $region32: #{tpu_custom_call.1} parent=1 // pred_region
      %64 = dma.done [#allocation6], 2048
    $region33: #{tpu_custom_call.1} parent=1 // pred_fallthru
      _
    %p65 = scmp.eq.s32.totalorder 0, 0
    // Predicated region
    $region34: #{tpu_custom_call.1} parent=1 // pred_check
      %p66 = pneg %p65
    $region35: #{tpu_custom_call.1} parent=1 // pred_check_branch
      %68 = sbr.rel (%p66) target = $region37
    $region36: #{tpu_custom_call.1} parent=1 // pred_region
      %69 = vst [vmem:[#allocation2] sm:$0xff] 0.0
    $region37: #{tpu_custom_call.1} parent=1 // pred_fallthru
      _
    %v70 = vld [vmem:[#allocation3] sm:$0xff]
    %v71 = vld [vmem:[#allocation5] sm:$0xff]
    %v72 = vld [vmem:[#allocation5 + $0x8] sm:$0xff]
    %v73 = vld [vmem:[#allocation5 + $0x10] sm:$0xff]
    %v74 = vld [vmem:[#allocation5 + $0x18] sm:$0xff]
    %v75 = vld [vmem:[#allocation5 + $0x20] sm:$0xff]
    %v76 = vld [vmem:[#allocation5 + $0x28] sm:$0xff]
    %v77 = vld [vmem:[#allocation5 + $0x30] sm:$0xff]
    %v78 = vld [vmem:[#allocation5 + $0x38] sm:$0xff]
    %v79 = vld [vmem:[#allocation5 + $0x40] sm:$0xff]
    %v80 = vld [vmem:[#allocation5 + $0x48] sm:$0xff]
    %v81 = vld [vmem:[#allocation5 + $0x50] sm:$0xff]
    %v82 = vld [vmem:[#allocation5 + $0x58] sm:$0xff]
    %v83 = vld [vmem:[#allocation5 + $0x60] sm:$0xff]
    %v84 = vld [vmem:[#allocation5 + $0x68] sm:$0xff]
    %v85 = vld [vmem:[#allocation5 + $0x70] sm:$0xff]
    %v86 = vld [vmem:[#allocation5 + $0x78] sm:$0xff]
    %v87 = vld [vmem:[%s2] sm:$0x1]
    %v89 = vperm.slane %v87, 0
    %91 = vmatpush.msra.mxu0 %v86
    %92 = vmatpush.msra.mxu0 %v85
    %93 = vmatpush.msra.mxu0 %v84
    %94 = vmatpush.msra.mxu0 %v83
    %95 = vmatpush.msra.mxu0 %v82
    %96 = vmatpush.msra.mxu0 %v81
    %97 = vmatpush.msra.mxu0 %v80
    %98 = vmatpush.msra.mxu0 %v79
    %99 = vmatpush.msra.mxu0 %v78
    %100 = vmatpush.msra.mxu0 %v77
    %101 = vmatpush.msra.mxu0 %v76
    %102 = vmatpush.msra.mxu0 %v75
    %103 = vmatpush.msra.mxu0 %v74
    %104 = vmatpush.msra.mxu0 %v73
    %105 = vmatpush.msra.mxu0 %v72
    %106 = vmatpush.msra.mxu0 %v71
    %107 = vmatmul.f32.gmra.mxu0 %v70
    %v108 = vpop.f32.mrf.mxu0
    %v109 = vadd.f32 %v89, %v108
    %110 = vdwg.mxu0
    %v111 = vmax.f32 %v109, 0.0
    %v112 = vld [vmem:[#allocation2] sm:$0xff]
    %v113 = vld [vmem:[#allocation7] sm:$0xff]
    %v114 = vld [vmem:[#allocation7 + $0x8] sm:$0xff]
    %v115 = vld [vmem:[#allocation7 + $0x10] sm:$0xff]
    %v116 = vld [vmem:[#allocation7 + $0x18] sm:$0xff]
    %v117 = vld [vmem:[#allocation7 + $0x20] sm:$0xff]
    %v118 = vld [vmem:[#allocation7 + $0x28] sm:$0xff]
    %v119 = vld [vmem:[#allocation7 + $0x30] sm:$0xff]
    %v120 = vld [vmem:[#allocation7 + $0x38] sm:$0xff]
    %v121 = vld [vmem:[#allocation7 + $0x40] sm:$0xff]
    %v122 = vld [vmem:[#allocation7 + $0x48] sm:$0xff]
    %v123 = vld [vmem:[#allocation7 + $0x50] sm:$0xff]
    %v124 = vld [vmem:[#allocation7 + $0x58] sm:$0xff]
    %v125 = vld [vmem:[#allocation7 + $0x60] sm:$0xff]
    %v126 = vld [vmem:[#allocation7 + $0x68] sm:$0xff]
    %v127 = vld [vmem:[#allocation7 + $0x70] sm:$0xff]
    %v128 = vld [vmem:[#allocation7 + $0x78] sm:$0xff]
    %129 = vmatpush.msra.mxu0 %v128
    %130 = vmatpush.msra.mxu0 %v127
    %131 = vmatpush.msra.mxu0 %v126
    %132 = vmatpush.msra.mxu0 %v125
    %133 = vmatpush.msra.mxu0 %v124
    %134 = vmatpush.msra.mxu0 %v123
    %135 = vmatpush.msra.mxu0 %v122
    %136 = vmatpush.msra.mxu0 %v121
    %137 = vmatpush.msra.mxu0 %v120
    %138 = vmatpush.msra.mxu0 %v119
    %139 = vmatpush.msra.mxu0 %v118
    %140 = vmatpush.msra.mxu0 %v117
    %141 = vmatpush.msra.mxu0 %v116
    %142 = vmatpush.msra.mxu0 %v115
    %143 = vmatpush.msra.mxu0 %v114
    %144 = vmatpush.msra.mxu0 %v113
    %145 = vmatmul.f32.gmra.mxu0 %v111
    %v146 = vpop.f32.mrf.mxu0
    %v147 = vadd.f32 0.0, %v146
    %148 = vdwg.mxu0
    %v149 = vadd.f32 %v112, %v147
    %150 = vst [vmem:[#allocation2] sm:$0xff] %v149
    // Predicated region
    $region38: #{tpu_custom_call.1} parent=1 // pred_check
      %p151 = pneg %p65
    $region39: #{tpu_custom_call.1} parent=1 // pred_check_branch
      %153 = sbr.rel (%p151) target = $region41
    $region40: #{tpu_custom_call.1} parent=1 // pred_region
      %v154 = vld [vmem:[#allocation2] sm:$0xff]
      %v155 = vld [vmem:[%s4] sm:$0x1]
      %v157 = vperm.slane %v155, 0
      %v159 = vadd.f32 %v154, %v157
      %vm160 = vcmask 15360
      %161 = vst.msk [vmem:[%s5] sm:$0xff] %vm160, %v159
    $region41: #{tpu_custom_call.1} parent=1 // pred_fallthru
      _
    // Predicated region
    $region42: #{tpu_custom_call.1} parent=1 // pred_check
      _
    $region43: #{tpu_custom_call.1} parent=1 // pred_check_branch
      %163 = sbr.rel (0) target = $region45
    $region44: #{tpu_custom_call.1} parent=1 // pred_region
      _
    $region45: #{tpu_custom_call.1} parent=1 // pred_fallthru
      _
    // Predicated region
    $region46: #{tpu_custom_call.1} parent=1 // pred_check
      _
    $region47: #{tpu_custom_call.1} parent=1 // pred_check_branch
      %165 = sbr.rel (0) target = $region49
    $region48: #{tpu_custom_call.1} parent=1 // pred_region
      _
    $region49: #{tpu_custom_call.1} parent=1 // pred_fallthru
      _
    %166 = vsyncpa [#allocation4], 1
    %167 = vsyncpa [#allocation6], 1

</llo_original>
